<compile_context>
chip_gen: v7x
topology: tpu7x:2x2x1
jax: 0.10.0
libtpu: 0.0.40
codegen_flags: <defaults>
</compile_context>

<pallas_src>
import functools

import jax
import jax.numpy as jnp
from jax import lax
from jax.experimental import pallas as pl
from jax.experimental.pallas import tpu as pltpu


def _retrieval_loss_kernel(scale_ref, src_ref, refT_ref, mrow_ref, mcol_ref,
                           out_ref, mc_ref, lc_ref, acc_ref):
    # scale_ref: SMEM (1,)        f32  -- logit scale (clamped in-kernel)
    # src_ref  : VMEM (tm, D)          -- base ("object") embedding row tile
    # refT_ref : VMEM (1, D, N)        -- full other-modality embeddings, pre-transposed
    # mrow_ref : VMEM (1, tm, 1)  f32  -- mask, row-tile layout
    # mcol_ref : VMEM (1, 1, N)   f32  -- mask, lane-dense full layout
    # out_ref  : VMEM (1, 1, 1)   f32  -- per-modality loss
    # mc_ref   : VMEM (1, N)      f32  -- running column max        (scratch)
    # lc_ref   : VMEM (1, N)      f32  -- running column sum-exp    (scratch)
    # acc_ref  : VMEM (1, 1)      f32  -- running masked forward-loss sum (scratch)
    i = pl.program_id(1)
    n_i = pl.num_programs(1)
    tm = src_ref.shape[0]

    scale = jnp.minimum(scale_ref[0], jnp.float32(100.0))

    @pl.when(i == 0)
    def _init():
        mc_ref[...] = jnp.full_like(mc_ref, -jnp.inf)
        lc_ref[...] = jnp.zeros_like(lc_ref)
        acc_ref[...] = jnp.zeros_like(acc_ref)

    src = src_ref[...]                                   # (tm, D) native dtype
    refT = refT_ref[0]                                   # (D, N)  native dtype

    # Fold the scale into the small operand; MXU matmul with f32 accumulation.
    src_scaled = (scale * src.astype(jnp.float32)).astype(src.dtype)
    logits = jnp.dot(src_scaled, refT,
                     preferred_element_type=jnp.float32)  # (tm, N) f32

    # Positive-pair logits: diagonal of the (tm,tm) sub-block at column offset
    # i*tm, extracted via a one-hot mask -- numerically identical to the values
    # inside lse_r, no extra operand / DMA needed.
    row_g = lax.broadcasted_iota(jnp.int32, logits.shape, 0) + i * tm
    col_g = lax.broadcasted_iota(jnp.int32, logits.shape, 1)
    onehot = (row_g == col_g).astype(jnp.float32)
    diag = jnp.sum(logits * onehot, axis=1, keepdims=True)          # (tm, 1)

    # Single full-size exp (row-shifted): exact forward (row) logsumexp.
    m_r = jnp.max(logits, axis=1, keepdims=True)                    # (tm, 1)
    p = jnp.exp(logits - m_r)                                       # (tm, N)  only big exp
    lse_r = m_r + jnp.log(jnp.sum(p, axis=1, keepdims=True))        # (tm, 1)

    mask_row = mrow_ref[0].astype(jnp.float32)                      # (tm, 1)
    acc_ref[...] = acc_ref[...] + jnp.sum(
        (lse_r - 2.0 * diag) * mask_row, axis=0, keepdims=True)     # (1, 1)

    # Backward (column) online logsumexp, state kept in row layout (1, N).
    # Column contribution rebuilt from p via separable rescale (VALU, not EUP):
    #   exp(logits - m_new) = p * exp(m_r - c) * exp(c - m_new),  c = tile max.
    m_tile = jnp.max(logits, axis=0, keepdims=True)                 # (1, N)
    m_prev = mc_ref[...]
    m_new = jnp.maximum(m_prev, m_tile)                             # (1, N)
    c = jnp.max(m_r, axis=0, keepdims=True)                         # (1, 1)
    r = jnp.exp(m_r - c)                                            # (tm, 1), <= 1
    # Clamp guards against f32 overflow (inf*0 -> NaN) if the in-tile logit
    # spread ever exceeds ~80 (possible only near the scale clamp of 100).
    s = jnp.exp(jnp.clip(c - m_new, -80.0, 80.0))                   # (1, N)
    col_sum = jnp.sum(p * r, axis=0, keepdims=True) * s             # (1, N)
    lc_ref[...] = lc_ref[...] * jnp.exp(m_prev - m_new) + col_sum
    mc_ref[...] = m_new

    @pl.when(i == n_i - 1)
    def _finalize():
        mask_col = mcol_ref[0].astype(jnp.float32)                  # (1, N)
        lse_c = mc_ref[...] + jnp.log(lc_ref[...])                  # (1, N)
        term_b = jnp.sum(lse_c * mask_col, axis=1, keepdims=True)   # (1, 1)
        denom = jnp.sum(mask_col, axis=1, keepdims=True)            # (1, 1)
        total = acc_ref[...] + term_b
        # Guarded masked mean: all-zero mask -> 0.0 (never NaN), as in PyTorch wrapper.
        loss = jnp.where(denom > 0.0, total / jnp.maximum(denom, 1.0), 0.0)
        out_ref[0] = loss


def _vmem_capacity_bytes():
    try:
        return int(pltpu.get_tpu_info().vmem_capacity_bytes)
    except Exception:
        return 64 * 1024 * 1024  # conservative (v7x-sized) fallback


def _pick_row_tile(n, itemsize):
    if n <= 512:
        return n
    # dtype-aware minimum sublane multiple: f32 -> 8, bf16 -> 16, int8/fp8 -> 32
    sub = {4: 8, 2: 16, 1: 32}.get(int(itemsize), 32)
    if _vmem_capacity_bytes() <= 64 * 1024 * 1024:
        prefs = (256, 128, 512)      # v7x: 64 MiB VMEM -> smaller tm first
    else:
        prefs = (512, 256, 128)      # v5e / v6e: 128 MiB VMEM
    for t in prefs:
        if n % t == 0 and t % sub == 0:
            return t
    return n  # fallback: monolithic rows


@functools.partial(jax.jit, static_argnames=("row_tile",))
def retrieval_loss_pallas(logit_scale, src_embed, ref_embeds, masks, *, row_tile=None):
    """Masked symmetric contrastive loss for M modalities in a single pallas_call.

    src_embed : (N, D)     base-modality embeddings (dtype preserved, e.g. bf16/f32)
    ref_embeds: (M, N, D)  stacked other-modality embeddings
    masks     : (M, N)     per-(modality, sample) validity mask
    returns   : (M,)       per-modality masked-mean symmetric CE loss (f32)
    """
    n, d = src_embed.shape
    m_mod = ref_embeds.shape[0]
    itemsize = jnp.dtype(src_embed.dtype).itemsize
    tm = _pick_row_tile(n, itemsize) if row_tile is None else int(row_tile)
    sub = {4: 8, 2: 16, 1: 32}.get(int(itemsize), 32)
    assert n % tm == 0 and (tm == n or tm % sub == 0), (n, tm, sub)
    n_i = n // tm

    scale = jnp.reshape(logit_scale.astype(jnp.float32), (1,))
    masks_f = masks.astype(jnp.float32)
    mask_row = masks_f.reshape(m_mod, n, 1)
    mask_col = masks_f.reshape(m_mod, 1, n)
    ref_t = jnp.swapaxes(ref_embeds, 1, 2)                # (M, D, N), once in the wrapper

    # Conservative VMEM budget, capped at 80% of the physical VMEM of this part
    # (leaves headroom for Mosaic internal scratch on 64 MiB v7x TensorCores,
    # while allowing >64 MiB on 128 MiB v5e/v6e parts).
    est = (2 * (tm * d + n * d) * itemsize      # src tile + resident ref^T, double-buffered
           + 8 * tm * n * 4                      # logits / exp / iota temporaries (generous)
           + 8 * n * 4 + 4 * tm * 4              # masks + LSE scratch
           + (2 << 20))                          # slack
    cap = int(0.8 * _vmem_capacity_bytes())
    vmem_limit = int(min(cap, max(est, 16 * 1024 * 1024)))

    out = pl.pallas_call(
        _retrieval_loss_kernel,
        out_shape=jax.ShapeDtypeStruct((m_mod, 1, 1), jnp.float32),
        grid=(m_mod, n_i),
        in_specs=[
            pl.BlockSpec(memory_space=pltpu.MemorySpace.SMEM),      # logit scale
            pl.BlockSpec((tm, d), lambda m, i: (i, 0)),             # src row tile
            pl.BlockSpec((1, d, n), lambda m, i: (m, 0, 0)),        # ref^T (resident over i)
            pl.BlockSpec((1, tm, 1), lambda m, i: (m, i, 0)),       # row mask tile
            pl.BlockSpec((1, 1, n), lambda m, i: (m, 0, 0)),        # lane-dense full mask
        ],
        out_specs=pl.BlockSpec((1, 1, 1), lambda m, i: (m, 0, 0)),
        scratch_shapes=[
            pltpu.VMEM((1, n), jnp.float32),    # column running max
            pltpu.VMEM((1, n), jnp.float32),    # column running sum-exp
            pltpu.VMEM((1, 1), jnp.float32),    # masked forward-loss accumulator
        ],
        compiler_params=pltpu.CompilerParams(
            dimension_semantics=("parallel", "arbitrary"),
            vmem_limit_bytes=vmem_limit,
        ),
    )(scale, src_embed, ref_t, mask_row, mask_col)
    return out.reshape(m_mod)


class RetrievalLoss:
    """JAX/Pallas port of the PyTorch RetrievalLoss module (forward only)."""

    def __init__(self):
        # nn.Parameter((torch.ones([]) * np.log(1/0.07)).exp())  -> scalar 1/0.07
        self.logit_scale = jnp.exp(jnp.log(jnp.float32(1.0 / 0.07)))

    def calculate_loss(self, src_embed, ref_embed, mask):
        losses = retrieval_loss_pallas(
            self.logit_scale, src_embed, ref_embed[None],
            mask.astype(jnp.float32).reshape(1, -1))
        return losses[0]

    def __call__(self, data_dict):
        base_type = 'object'
        embeds = data_dict['embeddings']
        a_embed = embeds[base_type]
        mods = [k for k in embeds if k != base_type]
        ref_stack = jnp.stack([embeds[k] for k in mods], axis=0)        # (M, N, D)
        base_mask = data_dict['scene_masks'][base_type].reshape(-1)
        masks = jnp.stack(
            [jnp.logical_and(base_mask, data_dict['scene_masks'][k].reshape(-1))
             for k in mods], axis=0).astype(jnp.float32)                # (M, N)
        losses = retrieval_loss_pallas(self.logit_scale, a_embed, ref_stack, masks)
        loss_dict = {f'loss_{k}': losses[j] for j, k in enumerate(mods)}
        total = jnp.sum(losses)
        loss_dict['total_loss'] = total
        return total, loss_dict


def _reference_loss(logit_scale, src, ref, mask):
    """Pure-JAX reference matching the PyTorch semantics."""
    scale = jnp.minimum(logit_scale, 100.0)
    lf = scale * jnp.matmul(src, ref.T, precision=lax.Precision.HIGHEST)
    lb = lf.T
    n = src.shape[0]
    idx = jnp.arange(n)
    ce_f = -jax.nn.log_softmax(lf, axis=-1)[idx, idx]
    ce_b = -jax.nn.log_softmax(lb, axis=-1)[idx, idx]
    loss = ce_f + ce_b
    return (loss * mask).sum() / mask.sum()


if __name__ == "__main__":
    key = jax.random.PRNGKey(0)
    N, D = 8, 32  # small shapes: 8 scenes, 32-d embeddings

    def _unit(x):
        return x / jnp.linalg.norm(x, axis=-1, keepdims=True)

    k1, k2, k3 = jax.random.split(key, 3)
    obj_embed = _unit(jax.random.normal(k1, (N, D), dtype=jnp.float32))
    img_embed = _unit(jax.random.normal(k2, (N, D), dtype=jnp.float32))
    pcd_embed = _unit(jax.random.normal(k3, (N, D), dtype=jnp.float32))

    data_dict = {
        'embeddings': {'object': obj_embed, 'image': img_embed, 'point': pcd_embed},
        'scene_masks': {
            'object': jnp.ones((N,), dtype=bool),
            'image': jnp.array([1, 1, 1, 1, 1, 1, 0, 1], dtype=bool),
            'point': jnp.array([1, 0, 1, 1, 1, 1, 1, 1], dtype=bool),
        },
    }

    loss_fn = RetrievalLoss()
    total_loss, loss_dict = loss_fn(data_dict)
    total_loss = jax.block_until_ready(total_loss)

    # sanity check against pure-JAX reference (per modality and total)
    ref_total = jnp.float32(0.0)
    for mod in ('image', 'point'):
        m = jnp.logical_and(data_dict['scene_masks']['object'],
                            data_dict['scene_masks'][mod]).astype(jnp.float32)
        r = _reference_loss(loss_fn.logit_scale, obj_embed,
                            data_dict['embeddings'][mod], m)
        assert jnp.allclose(loss_dict[f'loss_{mod}'], r, rtol=1e-3, atol=1e-3), (
            mod, loss_dict[f'loss_{mod}'], r)
        ref_total = ref_total + r

    assert not bool(jnp.isnan(total_loss)), "Loss Coming NaN!!!"
    assert jnp.allclose(total_loss, ref_total, rtol=1e-3, atol=1e-3), (total_loss, ref_total)

    # also exercise the row-tiled online column-logsumexp path (2 row tiles of 8)
    N2 = 16
    k4, k5 = jax.random.split(jax.random.PRNGKey(1))
    src2 = _unit(jax.random.normal(k4, (N2, D), dtype=jnp.float32))
    ref2 = _unit(jax.random.normal(k5, (N2, D), dtype=jnp.float32))
    mask2 = jnp.ones((N2,), jnp.float32).at[3].set(0.0)
    tiled = retrieval_loss_pallas(loss_fn.logit_scale, src2, ref2[None],
                                  mask2[None], row_tile=8)[0]
    tiled = jax.block_until_ready(tiled)
    ref2_loss = _reference_loss(loss_fn.logit_scale, src2, ref2, mask2)
    assert jnp.allclose(tiled, ref2_loss, rtol=1e-3, atol=1e-3), (tiled, ref2_loss)

    print("KERNEL_OK")
</pallas_src>

<mosaic_0001>
module attributes {stable_mosaic.version = 11 : i64} {
  func.func @_retrieval_loss_kernel(%arg0: i32, %arg1: i32, %arg2: memref<1xf32, #tpu.memory_space<smem>>, %arg3: memref<8x32xf32, #tpu.memory_space<vmem>>, %arg4: memref<1x32x8xf32, #tpu.memory_space<vmem>>, %arg5: memref<1x8x1xf32, #tpu.memory_space<vmem>>, %arg6: memref<1x1x8xf32, #tpu.memory_space<vmem>>, %arg7: memref<1x1x1xf32, #tpu.memory_space<vmem>>, %arg8: memref<1x8xf32, #tpu.memory_space<vmem>>, %arg9: memref<1x8xf32, #tpu.memory_space<vmem>>, %arg10: memref<1x1xf32, #tpu.memory_space<vmem>>) attributes {dimension_semantics = [#tpu.dimension_semantics<parallel>, #tpu.dimension_semantics<arbitrary>], iteration_bounds = array<i64: 2, 1>, scalar_prefetch = 0 : i64, scratch_operands = 3 : i64, tpu.core_type = #tpu.core_type<tc>, window_params = [{transform_indices = @transform_0, window_bounds = array<i64: 1>}, {transform_indices = @transform_1, window_bounds = array<i64: 8, 32>}, {transform_indices = @transform_2, window_bounds = array<i64: 1, 32, 8>}, {transform_indices = @transform_3, window_bounds = array<i64: 1, 8, 1>}, {transform_indices = @transform_4, window_bounds = array<i64: 1, 1, 8>}, {transform_indices = @transform_5, window_bounds = array<i64: 1, 1, 1>}]} {
    %c0 = arith.constant 0 : index
    %0 = memref.load %arg2[%c0] : memref<1xf32, #tpu.memory_space<smem>>
    %cst = arith.constant 1.000000e+02 : f32
    %1 = arith.minimumf %0, %cst : f32
    %c0_i32 = arith.constant 0 : i32
    %2 = arith.cmpi eq, %arg1, %c0_i32 : i32
    %3 = arith.extui %2 : i1 to i32
    %c0_i32_0 = arith.constant 0 : i32
    %4 = arith.cmpi ne, %3, %c0_i32_0 : i32
    scf.if %4 {
      %cst_34 = arith.constant 0xFF800000 : f32
      %73 = vector.broadcast %cst_34 : f32 to vector<1x8xf32>
      %c0_35 = arith.constant 0 : index
      %c0_36 = arith.constant 0 : index
      %74 = vector.load %arg8[%c0_35, %c0_36] : memref<1x8xf32, #tpu.memory_space<vmem>>, vector<1x8xf32>
      tpu.vector_store %arg8[%c0_35, %c0_36], %73 {strides = array<i32>} : memref<1x8xf32, #tpu.memory_space<vmem>>, vector<1x8xf32>,
      %cst_37 = arith.constant 0.000000e+00 : f32
      %75 = vector.broadcast %cst_37 : f32 to vector<1x8xf32>
      %c0_38 = arith.constant 0 : index
      %c0_39 = arith.constant 0 : index
      %76 = vector.load %arg9[%c0_38, %c0_39] : memref<1x8xf32, #tpu.memory_space<vmem>>, vector<1x8xf32>
      tpu.vector_store %arg9[%c0_38, %c0_39], %75 {strides = array<i32>} : memref<1x8xf32, #tpu.memory_space<vmem>>, vector<1x8xf32>,
      %cst_40 = arith.constant 0.000000e+00 : f32
      %77 = vector.broadcast %cst_40 : f32 to vector<1x1xf32>
      %c0_41 = arith.constant 0 : index
      %c0_42 = arith.constant 0 : index
      %78 = vector.load %arg10[%c0_41, %c0_42] : memref<1x1xf32, #tpu.memory_space<vmem>>, vector<1x1xf32>
      tpu.vector_store %arg10[%c0_41, %c0_42], %77 {strides = array<i32>} : memref<1x1xf32, #tpu.memory_space<vmem>>, vector<1x1xf32>,
    } else {
    }
    %c0_1 = arith.constant 0 : index
    %c0_2 = arith.constant 0 : index
    %5 = vector.load %arg3[%c0_1, %c0_2] : memref<8x32xf32, #tpu.memory_space<vmem>>, vector<8x32xf32>
    %c0_3 = arith.constant 0 : index
    %c0_4 = arith.constant 0 : index
    %c0_5 = arith.constant 0 : index
    %6 = vector.load %arg4[%c0_3, %c0_4, %c0_5] : memref<1x32x8xf32, #tpu.memory_space<vmem>>, vector<1x32x8xf32>
    %7 = vector.shape_cast %6 : vector<1x32x8xf32> to vector<32x8xf32>
    %8 = vector.broadcast %1 : f32 to vector<8x32xf32>
    %9 = arith.mulf %8, %5 : vector<8x32xf32>
    %cst_6 = arith.constant dense<0.000000e+00> : vector<8x8xf32>
    %10 = tpu.matmul %9, %7, %cst_6 {dimension_numbers = #tpu.dot_dimension_numbers<[1], [0], [0], [1], [0, 0, 1, 1], [], []>} : vector<8x32xf32>, vector<32x8xf32>, vector<8x8xf32> -> vector<8x8xf32>
    %11 = tpu.iota {dimensions = array<i32: 0>} : vector<8x8xi32>
    %c8_i32 = arith.constant 8 : i32
    %12 = arith.muli %arg1, %c8_i32 : i32
    %13 = vector.broadcast %12 : i32 to vector<8x8xi32>
    %14 = arith.addi %11, %13 : vector<8x8xi32>
    %15 = tpu.iota {dimensions = array<i32: 1>} : vector<8x8xi32>
    %16 = arith.cmpi eq, %14, %15 : vector<8x8xi32>
    %17 = arith.extui %16 : vector<8x8xi1> to vector<8x8xi32>
    %18 = arith.sitofp %17 : vector<8x8xi32> to vector<8x8xf32>
    %19 = arith.mulf %10, %18 : vector<8x8xf32>
    %cst_7 = arith.constant dense<0.000000e+00> : vector<8xf32>
    %20 = vector.multi_reduction <add>, %19, %cst_7 [1] : vector<8x8xf32> to vector<8xf32>
    %21 = vector.shape_cast %20 : vector<8xf32> to vector<8x1xf32>
    %cst_8 = arith.constant dense<0xFF800000> : vector<8xf32>
    %22 = vector.multi_reduction <maximumf>, %10, %cst_8 [1] : vector<8x8xf32> to vector<8xf32>
    %23 = vector.shape_cast %22 : vector<8xf32> to vector<8x1xf32>
    %24 = vector.broadcast %23 : vector<8x1xf32> to vector<8x8xf32>
    %25 = arith.subf %10, %24 : vector<8x8xf32>
    %26 = math.exp %25 : vector<8x8xf32>
    %cst_9 = arith.constant dense<0.000000e+00> : vector<8xf32>
    %27 = vector.multi_reduction <add>, %26, %cst_9 [1] : vector<8x8xf32> to vector<8xf32>
    %28 = vector.shape_cast %27 : vector<8xf32> to vector<8x1xf32>
    %29 = math.log %28 : vector<8x1xf32>
    %30 = arith.addf %23, %29 : vector<8x1xf32>
    %c0_10 = arith.constant 0 : index
    %c0_11 = arith.constant 0 : index
    %c0_12 = arith.constant 0 : index
    %31 = vector.load %arg5[%c0_10, %c0_11, %c0_12] : memref<1x8x1xf32, #tpu.memory_space<vmem>>, vector<1x8x1xf32>
    %32 = vector.shape_cast %31 : vector<1x8x1xf32> to vector<8x1xf32>
    %c0_13 = arith.constant 0 : index
    %c0_14 = arith.constant 0 : index
    %33 = vector.load %arg10[%c0_13, %c0_14] : memref<1x1xf32, #tpu.memory_space<vmem>>, vector<1x1xf32>
    %cst_15 = arith.constant 2.000000e+00 : f32
    %34 = vector.broadcast %cst_15 : f32 to vector<8x1xf32>
    %35 = arith.mulf %34, %21 : vector<8x1xf32>
    %36 = arith.subf %30, %35 : vector<8x1xf32>
    %37 = arith.mulf %36, %32 : vector<8x1xf32>
    %cst_16 = arith.constant dense<0.000000e+00> : vector<1xf32>
    %38 = vector.multi_reduction <add>, %37, %cst_16 [0] : vector<8x1xf32> to vector<1xf32>
    %39 = vector.shape_cast %38 : vector<1xf32> to vector<1x1xf32>
    %40 = arith.addf %33, %39 : vector<1x1xf32>
    %c0_17 = arith.constant 0 : index
    %c0_18 = arith.constant 0 : index
    %41 = vector.load %arg10[%c0_17, %c0_18] : memref<1x1xf32, #tpu.memory_space<vmem>>, vector<1x1xf32>
    tpu.vector_store %arg10[%c0_17, %c0_18], %40 {strides = array<i32>} : memref<1x1xf32, #tpu.memory_space<vmem>>, vector<1x1xf32>,
    %cst_19 = arith.constant dense<0xFF800000> : vector<8xf32>
    %42 = vector.multi_reduction <maximumf>, %10, %cst_19 [0] : vector<8x8xf32> to vector<8xf32>
    %43 = vector.shape_cast %42 : vector<8xf32> to vector<1x8xf32>
    %c0_20 = arith.constant 0 : index
    %c0_21 = arith.constant 0 : index
    %44 = vector.load %arg8[%c0_20, %c0_21] : memref<1x8xf32, #tpu.memory_space<vmem>>, vector<1x8xf32>
    %45 = arith.maximumf %44, %43 : vector<1x8xf32>
    %cst_22 = arith.constant dense<0xFF800000> : vector<1xf32>
    %46 = vector.multi_reduction <maximumf>, %23, %cst_22 [0] : vector<8x1xf32> to vector<1xf32>
    %47 = vector.shape_cast %46 : vector<1xf32> to vector<1x1xf32>
    %48 = vector.broadcast %47 : vector<1x1xf32> to vector<8x1xf32>
    %49 = arith.subf %23, %48 : vector<8x1xf32>
    %50 = math.exp %49 : vector<8x1xf32>
    %51 = vector.broadcast %47 : vector<1x1xf32> to vector<1x8xf32>
    %52 = arith.subf %51, %45 : vector<1x8xf32>
    %cst_23 = arith.constant -8.000000e+01 : f32
    %cst_24 = arith.constant 8.000000e+01 : f32
    %53 = vector.broadcast %cst_23 : f32 to vector<1x8xf32>
    %54 = arith.maximumf %53, %52 : vector<1x8xf32>
    %55 = vector.broadcast %cst_24 : f32 to vector<1x8xf32>
    %56 = arith.minimumf %55, %54 : vector<1x8xf32>
    %57 = math.exp %56 : vector<1x8xf32>
    %58 = vector.broadcast %50 : vector<8x1xf32> to vector<8x8xf32>
    %59 = arith.mulf %26, %58 : vector<8x8xf32>
    %cst_25 = arith.constant dense<0.000000e+00> : vector<8xf32>
    %60 = vector.multi_reduction <add>, %59, %cst_25 [0] : vector<8x8xf32> to vector<8xf32>
    %61 = vector.shape_cast %60 : vector<8xf32> to vector<1x8xf32>
    %62 = arith.mulf %61, %57 : vector<1x8xf32>
    %c0_26 = arith.constant 0 : index
    %c0_27 = arith.constant 0 : index
    %63 = vector.load %arg9[%c0_26, %c0_27] : memref<1x8xf32, #tpu.memory_space<vmem>>, vector<1x8xf32>
    %64 = arith.subf %44, %45 : vector<1x8xf32>
    %65 = math.exp %64 : vector<1x8xf32>
    %66 = arith.mulf %63, %65 : vector<1x8xf32>
    %67 = arith.addf %66, %62 : vector<1x8xf32>
    %c0_28 = arith.constant 0 : index
    %c0_29 = arith.constant 0 : index
    %68 = vector.load %arg9[%c0_28, %c0_29] : memref<1x8xf32, #tpu.memory_space<vmem>>, vector<1x8xf32>
    tpu.vector_store %arg9[%c0_28, %c0_29], %67 {strides = array<i32>} : memref<1x8xf32, #tpu.memory_space<vmem>>, vector<1x8xf32>,
    %c0_30 = arith.constant 0 : index
    %c0_31 = arith.constant 0 : index
    %69 = vector.load %arg8[%c0_30, %c0_31] : memref<1x8xf32, #tpu.memory_space<vmem>>, vector<1x8xf32>
    tpu.vector_store %arg8[%c0_30, %c0_31], %45 {strides = array<i32>} : memref<1x8xf32, #tpu.memory_space<vmem>>, vector<1x8xf32>,
    %c0_i32_32 = arith.constant 0 : i32
    %70 = arith.cmpi eq, %arg1, %c0_i32_32 : i32
    %71 = arith.extui %70 : i1 to i32
    %c0_i32_33 = arith.constant 0 : i32
    %72 = arith.cmpi ne, %71, %c0_i32_33 : i32
    scf.if %72 {
      %c0_34 = arith.constant 0 : index
      %c0_35 = arith.constant 0 : index
      %c0_36 = arith.constant 0 : index
      %73 = vector.load %arg6[%c0_34, %c0_35, %c0_36] : memref<1x1x8xf32, #tpu.memory_space<vmem>>, vector<1x1x8xf32>
      %74 = vector.shape_cast %73 : vector<1x1x8xf32> to vector<1x8xf32>
      %c0_37 = arith.constant 0 : index
      %c0_38 = arith.constant 0 : index
      %75 = vector.load %arg8[%c0_37, %c0_38] : memref<1x8xf32, #tpu.memory_space<vmem>>, vector<1x8xf32>
      %c0_39 = arith.constant 0 : index
      %c0_40 = arith.constant 0 : index
      %76 = vector.load %arg9[%c0_39, %c0_40] : memref<1x8xf32, #tpu.memory_space<vmem>>, vector<1x8xf32>
      %77 = math.log %76 : vector<1x8xf32>
      %78 = arith.addf %75, %77 : vector<1x8xf32>
      %79 = arith.mulf %78, %74 : vector<1x8xf32>
      %cst_41 = arith.constant dense<0.000000e+00> : vector<1xf32>
      %80 = vector.multi_reduction <add>, %79, %cst_41 [1] : vector<1x8xf32> to vector<1xf32>
      %81 = vector.shape_cast %80 : vector<1xf32> to vector<1x1xf32>
      %cst_42 = arith.constant dense<0.000000e+00> : vector<1xf32>
      %82 = vector.multi_reduction <add>, %74, %cst_42 [1] : vector<1x8xf32> to vector<1xf32>
      %83 = vector.shape_cast %82 : vector<1xf32> to vector<1x1xf32>
      %c0_43 = arith.constant 0 : index
      %c0_44 = arith.constant 0 : index
      %84 = vector.load %arg10[%c0_43, %c0_44] : memref<1x1xf32, #tpu.memory_space<vmem>>, vector<1x1xf32>
      %85 = arith.addf %84, %81 : vector<1x1xf32>
      %cst_45 = arith.constant 0.000000e+00 : f32
      %86 = vector.broadcast %cst_45 : f32 to vector<1x1xf32>
      %87 = arith.cmpf ogt, %83, %86 : vector<1x1xf32>
      %cst_46 = arith.constant 1.000000e+00 : f32
      %88 = vector.broadcast %cst_46 : f32 to vector<1x1xf32>
      %89 = arith.maximumf %83, %88 : vector<1x1xf32>
      %90 = arith.divf %85, %89 : vector<1x1xf32>
      %cst_47 = arith.constant 0.000000e+00 : f32
      %91 = vector.broadcast %cst_47 : f32 to vector<1x1xf32>
      %92 = arith.select %87, %90, %91 : vector<1x1xi1>, vector<1x1xf32>
      %c0_48 = arith.constant 0 : index
      %c0_49 = arith.constant 0 : index
      %c0_50 = arith.constant 0 : index
      %93 = vector.load %arg7[%c0_48, %c0_49, %c0_50] : memref<1x1x1xf32, #tpu.memory_space<vmem>>, vector<1x1x1xf32>
      %94 = vector.shape_cast %93 : vector<1x1x1xf32> to vector<1x1xf32>
      %95 = vector.shape_cast %92 : vector<1x1xf32> to vector<1x1x1xf32>
      tpu.vector_store %arg7[%c0_48, %c0_49, %c0_50], %95 {strides = array<i32>} : memref<1x1x1xf32, #tpu.memory_space<vmem>>, vector<1x1x1xf32>,
    } else {
    }
    return
  }
  func.func @transform_0(%arg0: i32, %arg1: i32) -> i32 {
    %c0_i32 = arith.constant 0 : i32
    %c0_i32_0 = arith.constant 0 : i32
    return %c0_i32 : i32
  }
  func.func @transform_1(%arg0: i32, %arg1: i32) -> (i32, i32) {
    %c0_i32 = arith.constant 0 : i32
    %c0_i32_0 = arith.constant 0 : i32
    return %arg1, %c0_i32 : i32, i32
  }
  func.func @transform_2(%arg0: i32, %arg1: i32) -> (i32, i32, i32) {
    %c0_i32 = arith.constant 0 : i32
    %c0_i32_0 = arith.constant 0 : i32
    %c0_i32_1 = arith.constant 0 : i32
    return %arg0, %c0_i32, %c0_i32_0 : i32, i32, i32
  }
  func.func @transform_3(%arg0: i32, %arg1: i32) -> (i32, i32, i32) {
    %c0_i32 = arith.constant 0 : i32
    %c0_i32_0 = arith.constant 0 : i32
    return %arg0, %arg1, %c0_i32 : i32, i32, i32
  }
  func.func @transform_4(%arg0: i32, %arg1: i32) -> (i32, i32, i32) {
    %c0_i32 = arith.constant 0 : i32
    %c0_i32_0 = arith.constant 0 : i32
    %c0_i32_1 = arith.constant 0 : i32
    return %arg0, %c0_i32, %c0_i32_0 : i32, i32, i32
  }
  func.func @transform_5(%arg0: i32, %arg1: i32) -> (i32, i32, i32) {
    %c0_i32 = arith.constant 0 : i32
    %c0_i32_0 = arith.constant 0 : i32
    %c0_i32_1 = arith.constant 0 : i32
    return %arg0, %c0_i32, %c0_i32_0 : i32, i32, i32
  }
}

</mosaic_0001>

<llo_original>
// kernel: retrieval_loss_pallas.1
$region0: #{retrieval_loss_pallas.1}
  #allocation0 [shape = 'u32[]', space=smem, size = 0x4, offset = 0x4, fixed_abs, tag = 'smem constant byte address 0x4 - core index']
  #allocation1 [shape = 'u32[144,128]{1,0:T(1,128)}', space=vmem, size = 0x12000, scoped, tag = 'internal scratch']
  #allocation2 [shape = 'f32[1,8]{1,0:T(1,128)}', space=vmem, size = 0x200, scoped, tag = 'scratch operand']
  #allocation3 [shape = 'f32[1,8]{1,0:T(1,128)}', space=vmem, size = 0x200, scoped, tag = 'scratch operand']
  #allocation4 [shape = 'f32[1,1]{1,0:T(1,128)}', space=vmem, size = 0x200, scoped, tag = 'scratch operand']
  #allocation5 [shape = 'f32[1]{0:T(128)S(6)}', space=smem, size = 0x200, scoped, tag = 'scoped memory for retrieval_loss_pallas.1']
  %s0 = inlined_call_operand.<no memory space> [shape: f32[1], index: 0, kind: input, shape index: {}]
  %s1 = inlined_call_operand.vmem [shape: f32[8,32], index: 1, kind: input, shape index: {}]
  %s2 = inlined_call_operand.vmem [shape: f32[2,32,8], index: 2, kind: input, shape index: {}]
  %s3 = inlined_call_operand.vmem [shape: f32[2,8,1], index: 3, kind: input, shape index: {}]
  %s4 = inlined_call_operand.vmem [shape: f32[2,1,8], index: 4, kind: input, shape index: {}]
  %s5 = inlined_call_operand.vmem [shape: f32[2,1,1], index: 5, kind: output, shape index: {}]
  %s6 = sld [smem:[#allocation0]]
  $region61: #{retrieval_loss_pallas.1} parent=0
    _
  %s8 = ssub.s32 1, %s6
  %s9 = scalar_select 0, %s8, %s6
  %10 = sst [smem:[#allocation5]] %s0
  loop: start=0, step=1, limit=4
  $region2: #{retrieval_loss_pallas.1} parent=0 // loop_pre_header
    _
  $region3: #{retrieval_loss_pallas.1} parent=0 // loop_header
    %s12 = sphi 0, %s16
    %p13 = scmp.ge.s32.totalorder %s12, 4
    %s19 = sphi 0, %s31
    %s20 = sphi 0, %s27
    %s21 = sphi 0, %s19
    %s22 = sphi 0, %s20
    %s23 = sphi 0, %s21
    %s24 = sphi 0, %s22
    %s32 = sphi 0, %s32
    %s34 = sphi 0, %s32
    %s35 = sphi 0, %s34
    %s49 = sphi 0, %s35
    %s55 = sphi 0, %s57
    %s58 = sphi 0, %s55
    %s59 = sphi 0, %s58
    %s75 = sphi 0, %s59
    %s81 = sphi 0, %s83
    %s84 = sphi 0, %s81
    %s85 = sphi 0, %s84
    %s101 = sphi 0, %s85
    %s109 = sphi 0, %s111
    %s112 = sphi 0, %s109
    %s113 = sphi 0, %s112
    %s129 = sphi 0, %s113
    %s135 = sphi 0, %s137
    %s138 = sphi 0, %s135
    %s139 = sphi 0, %s138
    %s155 = sphi 0, %s139
    %s161 = sphi 0, %s163
    %s164 = sphi 0, %s161
    %s165 = sphi 0, %s164
    %s181 = sphi 0, %s165
  $region4: #{retrieval_loss_pallas.1} parent=0 // loop_header_branch
    %15 = sbr.rel (%p13) target = $region8
  $region5: #{retrieval_loss_pallas.1} parent=0 // loop_body
    %s17 = ssub.s32 %s12, 1
    %s18 = ssub.s32 %s12, 2
    %s25 = sadd.s32 1, %s20
    %p26 = scmp.ge.s32.totalorder %s25, 1
    %s27 = scalar_select %p26, 0, %s25
    %s28 = sadd.s32 1, %s19
    %s29 = scalar_select %p26, %s28, %s19
    %p30 = scmp.ge.s32.totalorder %s29, 2
    %s31 = scalar_select %p30, 0, %s29
    %s33 = sadd.s32 %s32, 1
    %p36 = scmp.eq.s32.totalorder %s12, 1
    %p37 = scmp.ne.s32.totalorder %s32, %s34
    %p38 = scmp.eq.s32.totalorder %s12, 0
    %p39 = por %p37, %p38
    %p40 = scmp.ne.s32.totalorder %s32, %s34
    %p41 = scmp.eq.s32.totalorder %s17, 1
    %p42 = por %p40, %p41
    %p43 = scmp.ne.s32.totalorder %s34, %s35
    %p44 = scmp.eq.s32.totalorder %s17, 0
    %p45 = por %p43, %p44
    %p46 = scmp.ne.s32.totalorder %s34, %s35
    %p47 = scmp.eq.s32.totalorder %s18, 1
    %p48 = por %p46, %p47
    %p50 = scmp.ne.s32.totalorder %s35, %s49
    %p51 = scmp.eq.s32.totalorder %s18, 0
    %p52 = por %p50, %p51
    %s53 = ssub.s32 %s20, %s27
    %p54 = scmp.eq.s32.totalorder %s53, 0
    %s56 = sadd.s32 %s55, 1
    %s57 = scalar_select %p54, %s55, %s56
    %p60 = pneg %p54
    %p61 = scmp.eq.s32.totalorder %s12, 1
    %p62 = por %p60, %p61
    %p63 = scmp.ne.s32.totalorder %s55, %s58
    %p64 = scmp.eq.s32.totalorder %s12, 0
    %p65 = por %p63, %p64
    %p66 = scmp.ne.s32.totalorder %s55, %s58
    %p67 = scmp.eq.s32.totalorder %s17, 1
    %p68 = por %p66, %p67
    %p69 = scmp.ne.s32.totalorder %s58, %s59
    %p70 = scmp.eq.s32.totalorder %s17, 0
    %p71 = por %p69, %p70
    %p72 = scmp.ne.s32.totalorder %s58, %s59
    %p73 = scmp.eq.s32.totalorder %s18, 1
    %p74 = por %p72, %p73
    %p76 = scmp.ne.s32.totalorder %s59, %s75
    %p77 = scmp.eq.s32.totalorder %s18, 0
    %p78 = por %p76, %p77
    %s79 = ssub.s32 %s19, %s31
    %p80 = scmp.eq.s32.totalorder %s79, 0
    %s82 = sadd.s32 %s81, 1
    %s83 = scalar_select %p80, %s81, %s82
    %p86 = pneg %p80
    %p87 = scmp.eq.s32.totalorder %s12, 1
    %p88 = por %p86, %p87
    %p89 = scmp.ne.s32.totalorder %s81, %s84
    %p90 = scmp.eq.s32.totalorder %s12, 0
    %p91 = por %p89, %p90
    %p92 = scmp.ne.s32.totalorder %s81, %s84
    %p93 = scmp.eq.s32.totalorder %s17, 1
    %p94 = por %p92, %p93
    %p95 = scmp.ne.s32.totalorder %s84, %s85
    %p96 = scmp.eq.s32.totalorder %s17, 0
    %p97 = por %p95, %p96
    %p98 = scmp.ne.s32.totalorder %s84, %s85
    %p99 = scmp.eq.s32.totalorder %s18, 1
    %p100 = por %p98, %p99
    %p102 = scmp.ne.s32.totalorder %s85, %s101
    %p103 = scmp.eq.s32.totalorder %s18, 0
    %p104 = por %p102, %p103
    %s105 = ssub.s32 %s19, %s31
    %s106 = ssub.s32 %s20, %s27
    %s107 = sor.u32 %s105, %s106
    %p108 = scmp.eq.s32.totalorder %s107, 0
    %s110 = sadd.s32 %s109, 1
    %s111 = scalar_select %p108, %s109, %s110
    %p114 = pneg %p108
    %p115 = scmp.eq.s32.totalorder %s12, 1
    %p116 = por %p114, %p115
    %p117 = scmp.ne.s32.totalorder %s109, %s112
    %p118 = scmp.eq.s32.totalorder %s12, 0
    %p119 = por %p117, %p118
    %p120 = scmp.ne.s32.totalorder %s109, %s112
    %p121 = scmp.eq.s32.totalorder %s17, 1
    %p122 = por %p120, %p121
    %p123 = scmp.ne.s32.totalorder %s112, %s113
    %p124 = scmp.eq.s32.totalorder %s17, 0
    %p125 = por %p123, %p124
    %p126 = scmp.ne.s32.totalorder %s112, %s113
    %p127 = scmp.eq.s32.totalorder %s18, 1
    %p128 = por %p126, %p127
    %p130 = scmp.ne.s32.totalorder %s113, %s129
    %p131 = scmp.eq.s32.totalorder %s18, 0
    %p132 = por %p130, %p131
    %s133 = ssub.s32 %s19, %s31
    %p134 = scmp.eq.s32.totalorder %s133, 0
    %s136 = sadd.s32 %s135, 1
    %s137 = scalar_select %p134, %s135, %s136
    %p140 = pneg %p134
    %p141 = scmp.eq.s32.totalorder %s12, 1
    %p142 = por %p140, %p141
    %p143 = scmp.ne.s32.totalorder %s135, %s138
    %p144 = scmp.eq.s32.totalorder %s12, 0
    %p145 = por %p143, %p144
    %p146 = scmp.ne.s32.totalorder %s135, %s138
    %p147 = scmp.eq.s32.totalorder %s17, 1
    %p148 = por %p146, %p147
    %p149 = scmp.ne.s32.totalorder %s138, %s139
    %p150 = scmp.eq.s32.totalorder %s17, 0
    %p151 = por %p149, %p150
    %p152 = scmp.ne.s32.totalorder %s138, %s139
    %p153 = scmp.eq.s32.totalorder %s18, 1
    %p154 = por %p152, %p153
    %p156 = scmp.ne.s32.totalorder %s139, %s155
    %p157 = scmp.eq.s32.totalorder %s18, 0
    %p158 = por %p156, %p157
    %s159 = ssub.s32 %s19, %s31
    %p160 = scmp.eq.s32.totalorder %s159, 0
    %s162 = sadd.s32 %s161, 1
    %s163 = scalar_select %p160, %s161, %s162
    %p166 = pneg %p160
    %p167 = scmp.eq.s32.totalorder %s12, 1
    %p168 = por %p166, %p167
    %p169 = scmp.ne.s32.totalorder %s161, %s164
    %p170 = scmp.eq.s32.totalorder %s12, 0
    %p171 = por %p169, %p170
    %p172 = scmp.ne.s32.totalorder %s161, %s164
    %p173 = scmp.eq.s32.totalorder %s17, 1
    %p174 = por %p172, %p173
    %p175 = scmp.ne.s32.totalorder %s164, %s165
    %p176 = scmp.eq.s32.totalorder %s17, 0
    %p177 = por %p175, %p176
    %p178 = scmp.ne.s32.totalorder %s164, %s165
    %p179 = scmp.eq.s32.totalorder %s18, 1
    %p180 = por %p178, %p179
    %p182 = scmp.ne.s32.totalorder %s165, %s181
    %p183 = scmp.eq.s32.totalorder %s18, 0
    %p184 = por %p182, %p183
    %p185 = scmp.le.s32.totalorder 1, %s12
    %p186 = scmp.lt.s32.totalorder %s12, 3
    %p187 = pnand %p185, %p186
    %p188 = pneg %p187
    // Predicated region
    $region9: #{retrieval_loss_pallas.1} parent=5 // pred_check
      _
    $region10: #{retrieval_loss_pallas.1} parent=5 // pred_check_branch
      %190 = sbr.rel (%p187) target = $region12
    $region11: #{retrieval_loss_pallas.1} parent=5 // pred_region
      %s191 = ssub.s32 %s12, 1
      // Predicated region
      $region13: #{retrieval_loss_pallas.1} parent=11 // pred_check
        %p192 = pneg %p45
      $region14: #{retrieval_loss_pallas.1} parent=11 // pred_check_branch
        %194 = sbr.rel (%p192) target = $region16
      $region15: #{retrieval_loss_pallas.1} parent=11 // pred_region
        _
      $region16: #{retrieval_loss_pallas.1} parent=11 // pred_fallthru
        _
      // Predicated region
      $region17: #{retrieval_loss_pallas.1} parent=11 // pred_check
        %p195 = pneg %p71
      $region18: #{retrieval_loss_pallas.1} parent=11 // pred_check_branch
        %197 = sbr.rel (%p195) target = $region20
      $region19: #{retrieval_loss_pallas.1} parent=11 // pred_region
        %p198 = scmp.lt.s32.totalorder %s22, 0
        %s199 = scalar_select %p198, %s22, 0
        %s200 = smul.addr %s199, 8
        %s201 = scalar_lea.vmem %s1, %s200
      $region20: #{retrieval_loss_pallas.1} parent=11 // pred_fallthru
        _
    $region12: #{retrieval_loss_pallas.1} parent=5 // pred_fallthru
      _
    %p202 = scmp.lt.s32.totalorder %s12, 2
    // Predicated region
    $region21: #{retrieval_loss_pallas.1} parent=5 // pred_check
      %p203 = pneg %p202
    $region22: #{retrieval_loss_pallas.1} parent=5 // pred_check_branch
      %205 = sbr.rel (%p203) target = $region24
    $region23: #{retrieval_loss_pallas.1} parent=5 // pred_region
      // Predicated region
      $region25: #{retrieval_loss_pallas.1} parent=23 // pred_check
        %p206 = pneg %p91
      $region26: #{retrieval_loss_pallas.1} parent=23 // pred_check_branch
        %208 = sbr.rel (%p206) target = $region28
      $region27: #{retrieval_loss_pallas.1} parent=23 // pred_region
        %p209 = scmp.lt.s32.totalorder %s19, 1
        %s210 = scalar_select %p209, %s19, 1
        %s211 = smul.addr %s210, 4
        %s212 = smul.addr %s211, 8
        %s213 = scalar_lea.vmem %s2, %s212
      $region28: #{retrieval_loss_pallas.1} parent=23 // pred_fallthru
        _
      // Predicated region
      $region29: #{retrieval_loss_pallas.1} parent=23 // pred_check
        %p214 = pneg %p119
      $region30: #{retrieval_loss_pallas.1} parent=23 // pred_check_branch
        %216 = sbr.rel (%p214) target = $region32
      $region31: #{retrieval_loss_pallas.1} parent=23 // pred_region
        %p217 = scmp.lt.s32.totalorder %s19, 1
        %s218 = scalar_select %p217, %s19, 1
        %p219 = scmp.lt.s32.totalorder %s20, 0
        %s220 = scalar_select %p219, %s20, 0
        %s221 = sadd.s32 %s220, %s218
        %s222 = smul.addr %s221, 8
        %s223 = scalar_lea.vmem %s3, %s222
      $region32: #{retrieval_loss_pallas.1} parent=23 // pred_fallthru
        _
      // Predicated region
      $region33: #{retrieval_loss_pallas.1} parent=23 // pred_check
        %p224 = pneg %p145
      $region34: #{retrieval_loss_pallas.1} parent=23 // pred_check_branch
        %226 = sbr.rel (%p224) target = $region36
      $region35: #{retrieval_loss_pallas.1} parent=23 // pred_region
        %p227 = scmp.lt.s32.totalorder %s19, 1
        %s228 = scalar_select %p227, %s19, 1
        %s229 = scalar_lea.vmem %s4, %s228
      $region36: #{retrieval_loss_pallas.1} parent=23 // pred_fallthru
        _
    $region24: #{retrieval_loss_pallas.1} parent=5 // pred_fallthru
      _
    %p230 = scmp.le.s32.totalorder 1, %s12
    %p231 = scmp.lt.s32.totalorder %s12, 3
    %p232 = pnand %p230, %p231
    %p233 = pneg %p232
    // Predicated region
    $region37: #{retrieval_loss_pallas.1} parent=5 // pred_check
      _
    $region38: #{retrieval_loss_pallas.1} parent=5 // pred_check_branch
      %235 = sbr.rel (%p232) target = $region40
    $region39: #{retrieval_loss_pallas.1} parent=5 // pred_region
      %s236 = ssub.s32 %s12, 1
      %p237 = pneg %p45
      %p238 = pneg %p42
      %p239 = scmp.lt.s32.totalorder %s22, 0
      %s240 = scalar_select %p239, %s22, 0
      %s241 = smul.addr %s240, 8
      %s242 = scalar_lea.vmem %s1, %s241
      %p243 = pneg %p71
      %p244 = pneg %p68
      %p245 = scmp.lt.s32.totalorder %s21, 1
      %s246 = scalar_select %p245, %s21, 1
      %s247 = smul.addr %s246, 4
      %s248 = smul.addr %s247, 8
      %s249 = scalar_lea.vmem %s2, %s248
      %p250 = pneg %p97
      %p251 = pneg %p94
      %p252 = scmp.lt.s32.totalorder %s21, 1
      %s253 = scalar_select %p252, %s21, 1
      %p254 = scmp.lt.s32.totalorder %s22, 0
      %s255 = scalar_select %p254, %s22, 0
      %s256 = sadd.s32 %s255, %s253
      %s257 = smul.addr %s256, 8
      %s258 = scalar_lea.vmem %s3, %s257
      %p259 = pneg %p125
      %p260 = pneg %p122
      %p261 = scmp.lt.s32.totalorder %s21, 1
      %s262 = scalar_select %p261, %s21, 1
      %s263 = scalar_lea.vmem %s4, %s262
      %p264 = pneg %p151
      %p265 = pneg %p148
      %p266 = pneg %p177
      %p267 = pneg %p174
      %p268 = scmp.lt.s32.totalorder %s21, 1
      %s269 = scalar_select %p268, %s21, 1
      %s270 = scalar_lea.vmem %s5, %s269
      %p271 = scmp.lt.s32.totalorder %s22, 0
      %s272 = scalar_select %p271, %s22, 0
      %s273 = smul.addr %s272, 8
      %s274 = scalar_lea.vmem %s1, %s273
      %p275 = scmp.lt.s32.totalorder %s21, 1
      %s276 = scalar_select %p275, %s21, 1
      %s277 = smul.addr %s276, 4
      %s278 = smul.addr %s277, 8
      %s279 = scalar_lea.vmem %s2, %s278
      %p280 = scmp.lt.s32.totalorder %s21, 1
      %s281 = scalar_select %p280, %s21, 1
      %p282 = scmp.lt.s32.totalorder %s22, 0
      %s283 = scalar_select %p282, %s22, 0
      %s284 = sadd.s32 %s283, %s281
      %s285 = smul.addr %s284, 8
      %s286 = scalar_lea.vmem %s3, %s285
      %p287 = scmp.lt.s32.totalorder %s21, 1
      %s288 = scalar_select %p287, %s21, 1
      %s289 = scalar_lea.vmem %s4, %s288
      %p290 = scmp.lt.s32.totalorder %s21, 1
      %s291 = scalar_select %p290, %s21, 1
      %s292 = scalar_lea.vmem %s5, %s291
      %s293 = sld [smem:[#allocation5]]
      %s294 = smin.f32 %s293, 100.0
      %p295 = scmp.eq.s32.totalorder %s22, 0
      // Predicated region
      $region41: #{retrieval_loss_pallas.1} parent=39 // pred_check
        %p296 = pneg %p295
      $region42: #{retrieval_loss_pallas.1} parent=39 // pred_check_branch
        %298 = sbr.rel (%p296) target = $region44
      $region43: #{retrieval_loss_pallas.1} parent=39 // pred_region
        %vm299 = vcmask 57344
        %300 = vst.msk [vmem:[#allocation2] sm:$0x1] %vm299, -inf
        %301 = vst.msk [vmem:[#allocation3] sm:$0x1] %vm299, 0.0
        %vm302 = vcmask 0
        %303 = vst.msk [vmem:[#allocation4] sm:$0x1] %vm302, 0.0
      $region44: #{retrieval_loss_pallas.1} parent=39 // pred_fallthru
        _
      %v304 = vld [vmem:[%s274] sm:$0xff]
      %v305 = vld [vmem:[%s279] sm:$0xff]
      %v306 = vld [vmem:[%s279 + $0x8] sm:$0xff]
      %v307 = vld [vmem:[%s279 + $0x10] sm:$0xff]
      %v308 = vld [vmem:[%s279 + $0x18] sm:$0xff]
      %v309 = vstv %s294
      %v310 = vmul.f32 %v309, %v304
      %vm311 = vcmask 261120
      %v313 = vsel %vm311, %v310, 0
      %315 = vmatprep.subr.mxu0 0.0
      %316 = vmatpush1.msra.mxu0 %v305
      %317 = vmatprep.subr.mxu0 0.0
      %318 = vmatpush1.msra.mxu0 %v306
      %319 = vmatprep.subr.mxu0 0.0
      %320 = vmatpush1.msra.mxu0 %v307
      %321 = vmatprep.subr.mxu0 0.0
      %322 = vmatpush1.msra.mxu0 %v308
      %323 = vmatprep.subr.mxu0 0.0
      %324 = vmatpush1.msra.mxu0 0.0
      %325 = vmatprep.subr.mxu0 0.0
      %326 = vmatpush1.msra.mxu0 0.0
      %327 = vmatprep.subr.mxu0 0.0
      %328 = vmatpush1.msra.mxu0 0.0
      %329 = vmatprep.subr.mxu0 0.0
      %330 = vmatpush1.msra.mxu0 0.0
      %331 = vmatprep.subr.mxu0 0.0
      %332 = vmatpush1.msra.mxu0 0.0
      %333 = vmatprep.subr.mxu0 0.0
      %334 = vmatpush1.msra.mxu0 0.0
      %335 = vmatprep.subr.mxu0 0.0
      %336 = vmatpush1.msra.mxu0 0.0
      %337 = vmatprep.subr.mxu0 0.0
      %338 = vmatpush1.msra.mxu0 0.0
      %339 = vmatprep.subr.mxu0 0.0
      %340 = vmatpush1.msra.mxu0 0.0
      %341 = vmatprep.subr.mxu0 0.0
      %342 = vmatpush1.msra.mxu0 0.0
      %343 = vmatprep.subr.mxu0 0.0
      %344 = vmatpush1.msra.mxu0 0.0
      %345 = vmatprep.subr.mxu0 0.0
      %346 = vmatpush1.msra.mxu0 0.0
      %347 = vmatprep.subr.mxu0 0.0
      %348 = vmatpush1.msra.mxu0 0.0
      %349 = vmatprep.subr.mxu0 0.0
      %350 = vmatpush1.msra.mxu0 0.0
      %351 = vmatprep.subr.mxu0 0.0
      %352 = vmatpush1.msra.mxu0 0.0
      %353 = vmatprep.subr.mxu0 0.0
      %354 = vmatpush1.msra.mxu0 0.0
      %355 = vmatprep.subr.mxu0 0.0
      %356 = vmatpush1.msra.mxu0 0.0
      %357 = vmatprep.subr.mxu0 0.0
      %358 = vmatpush1.msra.mxu0 0.0
      %359 = vmatprep.subr.mxu0 0.0
      %360 = vmatpush1.msra.mxu0 0.0
      %361 = vmatprep.subr.mxu0 0.0
      %362 = vmatpush1.msra.mxu0 0.0
      %363 = vmatprep.subr.mxu0 0.0
      %364 = vmatpush1.msra.mxu0 0.0
      %365 = vmatprep.subr.mxu0 0.0
      %366 = vmatpush1.msra.mxu0 0.0
      %367 = vmatprep.subr.mxu0 0.0
      %368 = vmatpush1.msra.mxu0 0.0
      %369 = vmatprep.subr.mxu0 0.0
      %370 = vmatpush1.msra.mxu0 0.0
      %371 = vmatprep.subr.mxu0 0.0
      %372 = vmatpush1.msra.mxu0 0.0
      %373 = vmatprep.subr.mxu0 0.0
      %374 = vmatpush1.msra.mxu0 0.0
      %375 = vmatprep.subr.mxu0 0.0
      %376 = vmatpush1.msra.mxu0 0.0
      %377 = vmatprep.subr.mxu0 0.0
      %378 = vmatpush1.msra.mxu0 0.0
      %379 = vmatprep.mubr.f32.mxu0 0.0
      %380 = vmatmul.mubr.f32.gmra.mrb[0].mxu0 %v313
      %v381 = vpop.f32.mrb[0].mxu0
      %v382 = vadd.f32 0.0, %v381
      %v383 = vpop.f32.mrb[0].mxu0
      %384 = vdwg.mxu0
      %v385 = vlaneseq
      %v386 = vshrl.u32 %v385, 7
      %s387 = smul.u32 %s22, 8
      %v388 = vstv %s387
      %v389 = vadd.s32 %v386, %v388
      %v390 = vlaneseq
      %v391 = vand.u32 %v390, 127
      %vm392 = vcmp.eq.s32.totalorder %v389, %v391
      %v393 = vsel %vm392, 1, 0
      %v394 = vcvt.s32.f32 %v393
      %v395 = vmul.f32 %v382, %v394
      %vm396 = vcmask 64512
      %v397 = vsel %vm396, %v395, 0.0
      %398 = vadd.xlane.f32.xlu0 %v397
      %v399 = vpop.xlane.xlu0 %398
      %v400 = vsel %vm396, %v382, -inf
      %401 = vmax.xlane.f32.xlu0 %v400
      %v402 = vpop.xlane.xlu0 %401
      %v403 = vsub.f32 %v382, %v402
      %v404 = vmul.f32 %v403, 1.442695
      %v405 = vpow.pop %v404
      %v406 = vsel %vm396, %v405, 0.0
      %407 = vadd.xlane.f32.xlu0 %v406
      %v408 = vpop.xlane.xlu0 %407
      %v409 = vlog2.pop %v408
      %v410 = vmul.f32 %v409, 0.6931472
      %v411 = vadd.f32 %v402, %v410
      %v412 = vld [vmem:[%s286] sm:$0xff]
      %v413 = vld [vmem:[#allocation4] sm:$0x1]
      %v414 = vmul.f32 %v399, 2.0
      %v415 = vsub.f32 %v411, %v414
      %v416 = vmul.f32 %v415, %v412
      %vm417 = vcmask 7168
      %v418 = vsel %vm417, %v416, 0.0
      %v419 = vrot.slane %v418, 4
      %v420 = vadd.f32 %v418, %v419
      %v421 = vrot.slane %v420, 2
      %v422 = vadd.f32 %v420, %v421
      %v423 = vrot.slane %v422, 1
      %v424 = vadd.f32 %v422, %v423
      %v425 = vadd.f32 %v413, %v424
      %vm426 = vcmask 0
      %427 = vst.msk [vmem:[#allocation4] sm:$0x1] %vm426, %v425
      %v428 = vrot.slane %v400, 4
      %v429 = vmax.f32 %v400, %v428
      %v430 = vrot.slane %v429, 2
      %v431 = vmax.f32 %v429, %v430
      %v432 = vrot.slane %v431, 1
      %v433 = vmax.f32 %v431, %v432
      %v434 = vld [vmem:[#allocation2] sm:$0x1]
      %v435 = vmax.f32 %v434, %v433
      %v436 = vrot.slane %v402, 4
      %v437 = vmax.f32 %v402, %v436
      %v438 = vrot.slane %v437, 2
      %v439 = vmax.f32 %v437, %v438
      %v440 = vrot.slane %v439, 1
      %v441 = vmax.f32 %v439, %v440
      %v442 = vsub.f32 %v402, %v441
      %v443 = vmul.f32 %v442, 1.442695
      %v444 = vpow.pop %v443
      %v445 = vsub.f32 %v441, %v435
      %v446 = vmax.f32 %v445, -80.0
      %v447 = vmin.f32 %v446, 80.0
      %v448 = vmul.f32 %v447, 1.442695
      %v449 = vpow.pop %v448
      %v450 = vmul.f32 %v405, %v444
      %v451 = vsel %vm396, %v450, 0.0
      %v452 = vrot.slane %v451, 4
      %v453 = vadd.f32 %v451, %v452
      %v454 = vrot.slane %v453, 2
      %v455 = vadd.f32 %v453, %v454
      %v456 = vrot.slane %v455, 1
      %v457 = vadd.f32 %v455, %v456
      %v458 = vmul.f32 %v457, %v449
      %v459 = vld [vmem:[#allocation3] sm:$0x1]
      %v460 = vsub.f32 %v434, %v435
      %v461 = vmul.f32 %v460, 1.442695
      %v462 = vpow.pop %v461
      %v463 = vmul.f32 %v459, %v462
      %v464 = vadd.f32 %v463, %v458
      %vm465 = vcmask 57344
      %466 = vst.msk [vmem:[#allocation3] sm:$0x1] %vm465, %v464
      %467 = vst.msk [vmem:[#allocation2] sm:$0x1] %vm465, %v435
      // Predicated region
      $region45: #{retrieval_loss_pallas.1} parent=39 // pred_check
        %p468 = pneg %p295
      $region46: #{retrieval_loss_pallas.1} parent=39 // pred_check_branch
        %470 = sbr.rel (%p468) target = $region48
      $region47: #{retrieval_loss_pallas.1} parent=39 // pred_region
        %v471 = vld [vmem:[%s289] sm:$0x1]
        %v472 = vld [vmem:[#allocation2] sm:$0x1]
        %v473 = vld [vmem:[#allocation3] sm:$0x1]
        %v474 = vlog2.pop %v473
        %v475 = vmul.f32 %v474, 0.6931472
        %v476 = vadd.f32 %v472, %v475
        %v477 = vmul.f32 %v476, %v471
        %v478 = vsel %vm465, %v477, 0.0
        %479 = vadd.xlane.f32.xlu0 %v478
        %v480 = vpop.xlane.xlu0 %479
        %v481 = vsel %vm465, %v471, 0.0
        %482 = vadd.xlane.f32.xlu0 %v481
        %v483 = vpop.xlane.xlu0 %482
        %v484 = vld [vmem:[#allocation4] sm:$0x1]
        %v485 = vadd.f32 %v484, %v480
        %vm486 = vcmp.gt.f32.partialorder %v483, 0.0
        %v487 = vmax.f32 %v483, 1.0
        %v488 = vrcp.pop %v487
        %v489 = vmul.f32 %v485, %v488
        %v490 = vsel %vm486, %v489, 0.0
        %491 = vst.msk [vmem:[%s292] sm:$0x1] %vm426, %v490
      $region48: #{retrieval_loss_pallas.1} parent=39 // pred_fallthru
        _
      %p492 = scmp.lt.s32.totalorder %s21, 1
      %s493 = scalar_select %p492, %s21, 1
      %s494 = scalar_lea.vmem %s5, %s493
      // Predicated region
      $region49: #{retrieval_loss_pallas.1} parent=39 // pred_check
        %p495 = pneg %p174
      $region50: #{retrieval_loss_pallas.1} parent=39 // pred_check_branch
        %497 = sbr.rel (%p495) target = $region52
      $region51: #{retrieval_loss_pallas.1} parent=39 // pred_region
        _
      $region52: #{retrieval_loss_pallas.1} parent=39 // pred_fallthru
        _
    $region40: #{retrieval_loss_pallas.1} parent=5 // pred_fallthru
      _
    %p498 = scmp.le.s32.totalorder 2, %s12
    // Predicated region
    $region53: #{retrieval_loss_pallas.1} parent=5 // pred_check
      %p499 = pneg %p498
    $region54: #{retrieval_loss_pallas.1} parent=5 // pred_check_branch
      %501 = sbr.rel (%p499) target = $region56
    $region55: #{retrieval_loss_pallas.1} parent=5 // pred_region
      %s502 = ssub.s32 %s12, 2
      // Predicated region
      $region57: #{retrieval_loss_pallas.1} parent=55 // pred_check
        %p503 = pneg %p180
      $region58: #{retrieval_loss_pallas.1} parent=55 // pred_check_branch
        %505 = sbr.rel (%p503) target = $region60
      $region59: #{retrieval_loss_pallas.1} parent=55 // pred_region
        %p506 = scmp.lt.s32.totalorder %s23, 1
        %s507 = scalar_select %p506, %s23, 1
        %s508 = scalar_lea.vmem %s5, %s507
      $region60: #{retrieval_loss_pallas.1} parent=55 // pred_fallthru
        _
    $region56: #{retrieval_loss_pallas.1} parent=5 // pred_fallthru
      _
  $region6: #{retrieval_loss_pallas.1} parent=0 // loop_footer
    %s16 = sadd.s32 1, %s12
  $region7: #{retrieval_loss_pallas.1} parent=0 // loop_footer_branch
    %11 = sbr.rel target = $region3
  $region8: #{retrieval_loss_pallas.1} parent=0 // loop_exit
    _

</llo_original>
